<compile_context>
chip_gen: v7x
topology: tpu7x:2x2x1
jax: 0.10.0
libtpu: 0.0.40
codegen_flags: <defaults>
</compile_context>

<pallas_src>
import jax
import jax.numpy as jnp
from jax import lax
from jax.experimental import pallas as pl
from jax.experimental.pallas import tpu as pltpu


def _ce_kernel(logits_ref, labels_ref, loss_ref):
    # logits_ref: (TN, C) input dtype; labels_ref: (TN, 1) int32;
    # loss_ref:   (1, 1, TN) f32 per-sample cross-entropy (lane-dense).
    x = logits_ref[...].astype(jnp.float32)                    # (TN, C) f32
    labels = labels_ref[...]                                    # (TN, 1) i32
    tn, c = x.shape

    # Numerically-stable log-softmax cross entropy, computed entirely from the
    # single shifted tile (only one (TN, C) f32 temporary kept live):
    #   loss_i = log(sum_j exp(x_ij - m_i)) - (x_i,label_i - m_i)
    m = jnp.max(x, axis=-1, keepdims=True)                      # (TN, 1)
    shifted = x - m                                             # (TN, C)
    lse = jnp.log(jnp.sum(jnp.exp(shifted), axis=-1, keepdims=True))  # (TN, 1)

    # Target logit via fused masked reduce (no dynamic gather on TPU).
    col = lax.broadcasted_iota(jnp.int32, (tn, c), 1)           # (TN, C) i32
    tgt = jnp.sum(jnp.where(col == labels, shifted, 0.0),
                  axis=-1, keepdims=True)                       # (TN, 1)

    # Lane-dense store: (TN, 1) -> (1, 1, TN) (sublane->lane relayout via XLU).
    loss_ref[...] = (lse - tgt).reshape(1, 1, tn)


def _sublane_multiple(dtype) -> int:
    """Minimum legal sublane multiple for a packed dtype: 8 / 16 / 32."""
    size = jnp.dtype(dtype).itemsize
    if size >= 4:
        return 8
    if size == 2:
        return 16
    return 32


def _per_row_vmem_bytes(c: int, itemsize: int) -> int:
    """Estimated VMEM bytes per batch row for the footprint model."""
    return (2 * c * itemsize      # double-buffered logits input tiles
            + 2 * c * 4           # f32 shifted tile + exp temporary
            + 2 * 128 * 4         # lane-padded int32 (TN,1) label buffers (x2)
            + 4 * 128 * 4)        # lane-padded (TN,1) f32 row statistics


def _choose_tile_rows(n, c, dtype, *, target_bytes=4 << 20, budget_bytes=20 << 20):
    """Rows per batch tile: as large as the VMEM budget allows, dtype-aware rounding."""
    itemsize = jnp.dtype(dtype).itemsize
    sub = _sublane_multiple(dtype)
    per_row = max(1, _per_row_vmem_bytes(c, itemsize))
    rows_budget = budget_bytes // per_row
    rows_target = target_bytes // max(1, c * itemsize)
    rows = max(sub, min(rows_budget, rows_target))
    if rows >= 128:
        rows = (rows // 128) * 128          # unmasked lane-dense loss stores
    else:
        rows = max(sub, (rows // sub) * sub)
    n_pad = ((n + sub - 1) // sub) * sub
    return max(sub, min(rows, n_pad))


def cross_entropy_loss(y_pred: jax.Array, y_true: jax.Array, *, tile_rows=None) -> jax.Array:
    """y_pred: (N, C) float logits; y_true: (N,) int class indices. Scalar f32 mean loss."""
    n, c = y_pred.shape
    in_dtype = y_pred.dtype
    itemsize = jnp.dtype(in_dtype).itemsize
    sub = _sublane_multiple(in_dtype)

    tn = tile_rows if tile_rows is not None else _choose_tile_rows(n, c, in_dtype)
    assert tn % sub == 0 and tn >= sub, (
        f"batch tile ({tn}) must be a multiple of {sub} sublanes for {in_dtype}")
    num_tiles = pl.cdiv(n, tn)

    labels = y_true.astype(jnp.int32).reshape(n, 1)

    # Explicit scoped-VMEM budget derived from the actual footprint, capped at
    # 48 MiB (safe on v7x's 64 MiB physical VMEM, well inside v5e/v6e's 128 MiB).
    footprint = tn * _per_row_vmem_bytes(c, itemsize) + 2 * 8 * max(tn, 128) * 4
    vmem_limit = int(min(48 << 20, max(16 << 20, footprint + (4 << 20))))

    cost = pl.CostEstimate(
        flops=6 * n * c,                    # sub/cmp/select/sum per element (rough)
        transcendentals=n * c + n,          # exp per element + log per row
        bytes_accessed=n * c * itemsize + n * 4 + n * 4,
    )

    per_tile = pl.pallas_call(
        _ce_kernel,
        out_shape=jax.ShapeDtypeStruct((num_tiles, 1, tn), jnp.float32),
        grid_spec=pltpu.PrefetchScalarGridSpec(
            num_scalar_prefetch=0,
            grid=(num_tiles,),
            in_specs=[
                pl.BlockSpec((tn, c), lambda i: (i, 0)),     # logits batch tile
                pl.BlockSpec((tn, 1), lambda i: (i, 0)),     # labels batch tile
            ],
            # Lane-dense per-sample-loss block for this tile.
            out_specs=pl.BlockSpec((1, 1, tn), lambda i: (i, 0, 0)),
        ),
        compiler_params=pltpu.CompilerParams(
            # Batch tiles are independent -> megacore-shardable (v7x 2 TCs).
            dimension_semantics=("parallel",),
            vmem_limit_bytes=vmem_limit,
        ),
        cost_estimate=cost,
    )(y_pred, labels)

    # TODO(synk): ignore_index=-100 / class weights / label_smoothing of torch CE
    #             are not handled (assumes all labels are valid class indices).
    # TODO(synk): LLM-vocab-scale C (>=32K) wants a trailing "arbitrary" class-chunk
    #             grid axis with online logsumexp to keep f32 temporaries in VMEM.
    # Drop padded rows of the ragged last tile, then mean-reduce in the wrapper
    # (negligible traffic; keeps the kernel's grid axis fully parallel).
    per_sample = per_tile.reshape(num_tiles * tn)[:n]
    return jnp.sum(per_sample) / jnp.float32(n)


def _reference(y_pred, y_true):
    logits = y_pred.astype(jnp.float32)
    logz = jax.scipy.special.logsumexp(logits, axis=-1)
    tgt = jnp.take_along_axis(logits, y_true[:, None].astype(jnp.int32), axis=-1)[:, 0]
    return jnp.mean(logz - tgt)


if __name__ == "__main__":
    key = jax.random.PRNGKey(0)
    k1, k2 = jax.random.split(key)
    N, C = 20, 32  # N not a multiple of the tile -> exercises the ragged last tile
    y_pred = jax.random.normal(k1, (N, C), dtype=jnp.float32)
    y_true = jax.random.randint(k2, (N,), 0, C, dtype=jnp.int32)

    ref = _reference(y_pred, y_true)

    # Multi-tile path: tile_rows=8 -> grid=(3,), last logits block partially OOB.
    loss = cross_entropy_loss(y_pred, y_true, tile_rows=8)
    jax.block_until_ready(loss)
    assert jnp.allclose(loss, ref, atol=2e-5, rtol=2e-5), (loss, ref)

    # Auto-tiled path (single block covering all rows, padded to a multiple of 8).
    loss2 = cross_entropy_loss(y_pred, y_true)
    jax.block_until_ready(loss2)
    assert jnp.allclose(loss2, ref, atol=2e-5, rtol=2e-5), (loss2, ref)

    # bf16 path exercises the dtype-aware sublane rounding (16-row multiples).
    y_pred_bf16 = y_pred.astype(jnp.bfloat16)
    ref_bf16 = _reference(y_pred_bf16, y_true)
    loss3 = cross_entropy_loss(y_pred_bf16, y_true)
    jax.block_until_ready(loss3)
    assert jnp.allclose(loss3, ref_bf16, atol=1e-4, rtol=1e-4), (loss3, ref_bf16)

    print("KERNEL_OK")
</pallas_src>

<mosaic_0001>
module attributes {stable_mosaic.version = 11 : i64} {
  func.func @_ce_kernel(%arg0: i32, %arg1: memref<8x32xf32, #tpu.memory_space<vmem>>, %arg2: memref<8x1xi32, #tpu.memory_space<vmem>>, %arg3: memref<1x1x8xf32, #tpu.memory_space<vmem>>) attributes {dimension_semantics = [#tpu.dimension_semantics<parallel>], iteration_bounds = array<i64: 3>, scalar_prefetch = 0 : i64, scratch_operands = 0 : i64, tpu.core_type = #tpu.core_type<tc>, window_params = [{transform_indices = @transform_0, window_bounds = array<i64: 8, 32>}, {transform_indices = @transform_1, window_bounds = array<i64: 8, 1>}, {transform_indices = @transform_2, window_bounds = array<i64: 1, 1, 8>}]} {
    %c0 = arith.constant 0 : index
    %c0_0 = arith.constant 0 : index
    %0 = vector.load %arg1[%c0, %c0_0] : memref<8x32xf32, #tpu.memory_space<vmem>>, vector<8x32xf32>
    %c0_1 = arith.constant 0 : index
    %c0_2 = arith.constant 0 : index
    %1 = vector.load %arg2[%c0_1, %c0_2] : memref<8x1xi32, #tpu.memory_space<vmem>>, vector<8x1xi32>
    %cst = arith.constant dense<0xFF800000> : vector<8xf32>
    %2 = vector.multi_reduction <maximumf>, %0, %cst [1] : vector<8x32xf32> to vector<8xf32>
    %3 = vector.shape_cast %2 : vector<8xf32> to vector<8x1xf32>
    %4 = vector.broadcast %3 : vector<8x1xf32> to vector<8x32xf32>
    %5 = arith.subf %0, %4 : vector<8x32xf32>
    %6 = math.exp %5 : vector<8x32xf32>
    %cst_3 = arith.constant dense<0.000000e+00> : vector<8xf32>
    %7 = vector.multi_reduction <add>, %6, %cst_3 [1] : vector<8x32xf32> to vector<8xf32>
    %8 = vector.shape_cast %7 : vector<8xf32> to vector<8x1xf32>
    %9 = math.log %8 : vector<8x1xf32>
    %10 = tpu.iota {dimensions = array<i32: 1>} : vector<8x32xi32>
    %11 = vector.broadcast %1 : vector<8x1xi32> to vector<8x32xi32>
    %12 = arith.cmpi eq, %10, %11 : vector<8x32xi32>
    %cst_4 = arith.constant 0.000000e+00 : f32
    %13 = vector.broadcast %cst_4 : f32 to vector<8x32xf32>
    %14 = arith.select %12, %5, %13 : vector<8x32xi1>, vector<8x32xf32>
    %cst_5 = arith.constant dense<0.000000e+00> : vector<8xf32>
    %15 = vector.multi_reduction <add>, %14, %cst_5 [1] : vector<8x32xf32> to vector<8xf32>
    %16 = vector.shape_cast %15 : vector<8xf32> to vector<8x1xf32>
    %17 = arith.subf %9, %16 : vector<8x1xf32>
    %18 = vector.shape_cast %17 : vector<8x1xf32> to vector<1x1x8xf32>
    %c0_6 = arith.constant 0 : index
    %c0_7 = arith.constant 0 : index
    %c0_8 = arith.constant 0 : index
    %19 = vector.load %arg3[%c0_6, %c0_7, %c0_8] : memref<1x1x8xf32, #tpu.memory_space<vmem>>, vector<1x1x8xf32>
    tpu.vector_store %arg3[%c0_6, %c0_7, %c0_8], %18 {strides = array<i32>} : memref<1x1x8xf32, #tpu.memory_space<vmem>>, vector<1x1x8xf32>,
    return
  }
  func.func @transform_0(%arg0: i32) -> (i32, i32) {
    %c0_i32 = arith.constant 0 : i32
    %c0_i32_0 = arith.constant 0 : i32
    return %arg0, %c0_i32 : i32, i32
  }
  func.func @transform_1(%arg0: i32) -> (i32, i32) {
    %c0_i32 = arith.constant 0 : i32
    %c0_i32_0 = arith.constant 0 : i32
    return %arg0, %c0_i32 : i32, i32
  }
  func.func @transform_2(%arg0: i32) -> (i32, i32, i32) {
    %c0_i32 = arith.constant 0 : i32
    %c0_i32_0 = arith.constant 0 : i32
    %c0_i32_1 = arith.constant 0 : i32
    return %arg0, %c0_i32, %c0_i32_0 : i32, i32, i32
  }
}

</mosaic_0001>

<llo_original>
// kernel: tpu_custom_call.1
$region0: #{tpu_custom_call.1}
  #allocation0 [shape = 'u32[]', space=smem, size = 0x4, offset = 0x4, fixed_abs, tag = 'smem constant byte address 0x4 - core index']
  #allocation1 [shape = 'u32[144,128]{1,0:T(1,128)}', space=vmem, size = 0x12000, scoped, tag = 'internal scratch']
  %s0 = inlined_call_operand.vmem [shape: f32[20,32], index: 0, kind: input, shape index: {}]
  %s1 = inlined_call_operand.vmem [shape: s32[20,1], index: 1, kind: input, shape index: {}]
  %s2 = inlined_call_operand.hbm [shape: f32[3,1,8], index: 2, kind: output, shape index: {}]
  %s3 = sld [smem:[#allocation0]]
  $region41: #{tpu_custom_call.1} parent=0
    _
  %s5 = ssub.s32 1, %s3
  %s6 = scalar_select 0, %s5, %s3
  $region1: #{tpu_custom_call.1} parent=0
    #allocation2 [shape = 'u8[1024]{0}', space=vmem, size = 0x400, scoped, tag = 'output window, operand 0']
    #allocation3 [shape = 's32[2]{0}', space=sflag, size = 0x8, scoped, tag = 'scoped memory for tpu_custom_call.1']
    %7 = vsyncpa [#allocation3], 0
    %s8 = scalar_lea.sflag [#allocation3], 1
    %9 = vsyncpa %s8, 0
    loop: start=0, step=1, limit=5
    $region2: #{tpu_custom_call.1} parent=1 // loop_pre_header
      _
    $region3: #{tpu_custom_call.1} parent=1 // loop_header
      %s11 = sphi 0, %s15
      %p12 = scmp.ge.s32.totalorder %s11, 5
      %s21 = sphi 0, %s23
      %s24 = sphi 0, %s21
      %s25 = sphi 0, %s24
      %s41 = sphi 0, %s25
      %s47 = sphi 0, %s49
      %s50 = sphi 0, %s47
      %s51 = sphi 0, %s50
      %s67 = sphi 0, %s51
      %s73 = sphi 0, %s75
      %s76 = sphi 0, %s73
      %s77 = sphi 0, %s76
      %s93 = sphi 0, %s77
    $region4: #{tpu_custom_call.1} parent=1 // loop_header_branch
      %14 = sbr.rel (%p12) target = $region8
    $region5: #{tpu_custom_call.1} parent=1 // loop_body
      %s16 = ssub.s32 %s11, 1
      %s17 = ssub.s32 %s11, 2
      %s18 = sadd.s32 %s11, 1
      %s19 = ssub.s32 %s11, %s18
      %p20 = scmp.eq.s32.totalorder %s19, 0
      %s22 = sadd.s32 %s21, 1
      %s23 = scalar_select %p20, %s21, %s22
      %p26 = pneg %p20
      %p27 = scmp.eq.s32.totalorder %s11, 2
      %p28 = por %p26, %p27
      %p29 = scmp.ne.s32.totalorder %s21, %s24
      %p30 = scmp.eq.s32.totalorder %s11, 0
      %p31 = por %p29, %p30
      %p32 = scmp.ne.s32.totalorder %s21, %s24
      %p33 = scmp.eq.s32.totalorder %s16, 2
      %p34 = por %p32, %p33
      %p35 = scmp.ne.s32.totalorder %s24, %s25
      %p36 = scmp.eq.s32.totalorder %s16, 0
      %p37 = por %p35, %p36
      %p38 = scmp.ne.s32.totalorder %s24, %s25
      %p39 = scmp.eq.s32.totalorder %s17, 2
      %p40 = por %p38, %p39
      %p42 = scmp.ne.s32.totalorder %s25, %s41
      %p43 = scmp.eq.s32.totalorder %s17, 0
      %p44 = por %p42, %p43
      %s45 = ssub.s32 %s11, %s18
      %p46 = scmp.eq.s32.totalorder %s45, 0
      %s48 = sadd.s32 %s47, 1
      %s49 = scalar_select %p46, %s47, %s48
      %p52 = pneg %p46
      %p53 = scmp.eq.s32.totalorder %s11, 2
      %p54 = por %p52, %p53
      %p55 = scmp.ne.s32.totalorder %s47, %s50
      %p56 = scmp.eq.s32.totalorder %s11, 0
      %p57 = por %p55, %p56
      %p58 = scmp.ne.s32.totalorder %s47, %s50
      %p59 = scmp.eq.s32.totalorder %s16, 2
      %p60 = por %p58, %p59
      %p61 = scmp.ne.s32.totalorder %s50, %s51
      %p62 = scmp.eq.s32.totalorder %s16, 0
      %p63 = por %p61, %p62
      %p64 = scmp.ne.s32.totalorder %s50, %s51
      %p65 = scmp.eq.s32.totalorder %s17, 2
      %p66 = por %p64, %p65
      %p68 = scmp.ne.s32.totalorder %s51, %s67
      %p69 = scmp.eq.s32.totalorder %s17, 0
      %p70 = por %p68, %p69
      %s71 = ssub.s32 %s11, %s18
      %p72 = scmp.eq.s32.totalorder %s71, 0
      %s74 = sadd.s32 %s73, 1
      %s75 = scalar_select %p72, %s73, %s74
      %p78 = pneg %p72
      %p79 = scmp.eq.s32.totalorder %s11, 2
      %p80 = por %p78, %p79
      %p81 = scmp.ne.s32.totalorder %s73, %s76
      %p82 = scmp.eq.s32.totalorder %s11, 0
      %p83 = por %p81, %p82
      %p84 = scmp.ne.s32.totalorder %s73, %s76
      %p85 = scmp.eq.s32.totalorder %s16, 2
      %p86 = por %p84, %p85
      %p87 = scmp.ne.s32.totalorder %s76, %s77
      %p88 = scmp.eq.s32.totalorder %s16, 0
      %p89 = por %p87, %p88
      %p90 = scmp.ne.s32.totalorder %s76, %s77
      %p91 = scmp.eq.s32.totalorder %s17, 2
      %p92 = por %p90, %p91
      %p94 = scmp.ne.s32.totalorder %s77, %s93
      %p95 = scmp.eq.s32.totalorder %s17, 0
      %p96 = por %p94, %p95
      %p97 = scmp.le.s32.totalorder 1, %s11
      %p98 = scmp.lt.s32.totalorder %s11, 4
      %p99 = pnand %p97, %p98
      %p100 = pneg %p99
      // Predicated region
      $region9: #{tpu_custom_call.1} parent=5 // pred_check
        _
      $region10: #{tpu_custom_call.1} parent=5 // pred_check_branch
        %102 = sbr.rel (%p99) target = $region12
      $region11: #{tpu_custom_call.1} parent=5 // pred_region
        %s103 = ssub.s32 %s11, 1
      $region12: #{tpu_custom_call.1} parent=5 // pred_fallthru
        _
      %p104 = scmp.lt.s32.totalorder %s11, 3
      // Predicated region
      $region13: #{tpu_custom_call.1} parent=5 // pred_check
        %p105 = pneg %p104
      $region14: #{tpu_custom_call.1} parent=5 // pred_check_branch
        %107 = sbr.rel (%p105) target = $region16
      $region15: #{tpu_custom_call.1} parent=5 // pred_region
        // Predicated region
        $region17: #{tpu_custom_call.1} parent=15 // pred_check
          %p108 = pneg %p31
        $region18: #{tpu_custom_call.1} parent=15 // pred_check_branch
          %110 = sbr.rel (%p108) target = $region20
        $region19: #{tpu_custom_call.1} parent=15 // pred_region
          %p111 = scmp.lt.s32.totalorder %s11, 2
          %s112 = scalar_select %p111, %s11, 2
          %s113 = smul.addr %s112, 8
          %s114 = scalar_lea.vmem %s0, %s113
        $region20: #{tpu_custom_call.1} parent=15 // pred_fallthru
          _
        // Predicated region
        $region21: #{tpu_custom_call.1} parent=15 // pred_check
          %p115 = pneg %p57
        $region22: #{tpu_custom_call.1} parent=15 // pred_check_branch
          %117 = sbr.rel (%p115) target = $region24
        $region23: #{tpu_custom_call.1} parent=15 // pred_region
          %p118 = scmp.lt.s32.totalorder %s11, 2
          %s119 = scalar_select %p118, %s11, 2
          %s120 = smul.addr %s119, 8
          %s121 = scalar_lea.vmem %s1, %s120
        $region24: #{tpu_custom_call.1} parent=15 // pred_fallthru
          _
      $region16: #{tpu_custom_call.1} parent=5 // pred_fallthru
        _
      %p122 = scmp.le.s32.totalorder 1, %s11
      %p123 = scmp.lt.s32.totalorder %s11, 4
      %p124 = pnand %p122, %p123
      %p125 = pneg %p124
      // Predicated region
      $region25: #{tpu_custom_call.1} parent=5 // pred_check
        _
      $region26: #{tpu_custom_call.1} parent=5 // pred_check_branch
        %127 = sbr.rel (%p124) target = $region28
      $region27: #{tpu_custom_call.1} parent=5 // pred_region
        %s128 = ssub.s32 %s11, 1
        %p129 = scmp.lt.s32.totalorder %s16, 2
        %s130 = scalar_select %p129, %s16, 2
        %s131 = smul.addr %s130, 8
        %s132 = scalar_lea.vmem %s0, %s131
        %p133 = pneg %p37
        %p134 = pneg %p34
        %p135 = scmp.lt.s32.totalorder %s16, 2
        %s136 = scalar_select %p135, %s16, 2
        %s137 = smul.addr %s136, 8
        %s138 = scalar_lea.vmem %s1, %s137
        %p139 = pneg %p63
        %p140 = pneg %p60
        %p141 = pneg %p89
        %p142 = pneg %p86
        %s143 = sand.u32 %s76, 1
        %s144 = scalar_lea.sflag [#allocation3], %s143
        %s145 = sand.u32 %s76, 1
        %s146 = scalar_lea.vmem [#allocation2], %s145
        %p147 = scmp.lt.s32.totalorder %s16, 2
        %s148 = scalar_select %p147, %s16, 2
        %s149 = smul.addr %s148, 8
        %s150 = scalar_lea.vmem %s0, %s149
        %p151 = scmp.lt.s32.totalorder %s16, 2
        %s152 = scalar_select %p151, %s16, 2
        %s153 = smul.addr %s152, 8
        %s154 = scalar_lea.vmem %s1, %s153
        %v155 = vld [vmem:[%s150] sm:$0xff]
        %v156 = vld [vmem:[%s154] sm:$0xff]
        %vm157 = vcmask 261120
        %v158 = vsel %vm157, %v155, -inf
        %159 = vmax.xlane.f32.xlu0 %v158
        %v160 = vpop.xlane.xlu0 %159
        %v161 = vsub.f32 %v155, %v160
        %v162 = vmul.f32 %v161, 1.442695
        %v163 = vpow.pop %v162
        %v164 = vsel %vm157, %v163, 0.0
        %165 = vadd.xlane.f32.xlu0 %v164
        %v166 = vpop.xlane.xlu0 %165
        %v167 = vlog2.pop %v166
        %v168 = vmul.f32 %v167, 0.6931472
        %v169 = vlaneseq
        %v170 = vand.u32 %v169, 127
        %171 = vset.pattern.permute.xlu0 0
        %172 = vperm.xlu0 %171, %v156
        %v173 = vpop.permute.xlu0 %172
        %vm174 = vcmp.eq.s32.totalorder %v170, %v173
        %v175 = vsel %vm174, %v161, 0.0
        %v176 = vsel %vm157, %v175, 0.0
        %177 = vadd.xlane.f32.xlu0 %v176
        %v178 = vpop.xlane.xlu0 %177
        %v179 = vsub.f32 %v168, %v178
        %v181 = vlaneseq
        %v182 = vshrl.u32 %v181, 7
        %v183 = vsub.s32 %v170, %v182
        %v184 = vrot.slane %v179, %v183
        %vm186 = vcmask 57344
        %187 = vst.msk [vmem:[%s146] sm:$0x1] %vm186, %v184
        %s188 = sand.u32 %s76, 1
        %s189 = scalar_lea.sflag [#allocation3], %s188
        %s190 = sand.u32 %s76, 1
        %s191 = scalar_lea.vmem [#allocation2], %s190
        // Predicated region
        $region29: #{tpu_custom_call.1} parent=27 // pred_check
          %p192 = pneg %p86
        $region30: #{tpu_custom_call.1} parent=27 // pred_check_branch
          %194 = sbr.rel (%p192) target = $region32
        $region31: #{tpu_custom_call.1} parent=27 // pred_region
          %s196 = ssub.s32 16, 16
          %197 = vsyncadd %s189, %s196
          %s198 = smul.addr %s16, 16
          %s199 = scalar_lea.hbm %s2, %s198
          %s201 = sshll.u32 %s191, 4
          %s202 = int_to_ptr.vmem [resolvable:$true] %s201
          %204 = dma.vmem_to_hbm [thread:$0]  %s202, 16, %s199, %s189
        $region32: #{tpu_custom_call.1} parent=27 // pred_fallthru
          _
      $region28: #{tpu_custom_call.1} parent=5 // pred_fallthru
        _
      %p205 = scmp.le.s32.totalorder 2, %s11
      // Predicated region
      $region33: #{tpu_custom_call.1} parent=5 // pred_check
        %p206 = pneg %p205
      $region34: #{tpu_custom_call.1} parent=5 // pred_check_branch
        %208 = sbr.rel (%p206) target = $region36
      $region35: #{tpu_custom_call.1} parent=5 // pred_region
        %s209 = ssub.s32 %s11, 2
        // Predicated region
        $region37: #{tpu_custom_call.1} parent=35 // pred_check
          %p210 = pneg %p92
        $region38: #{tpu_custom_call.1} parent=35 // pred_check_branch
          %212 = sbr.rel (%p210) target = $region40
        $region39: #{tpu_custom_call.1} parent=35 // pred_region
          %s213 = sand.u32 %s77, 1
          %s214 = scalar_lea.sflag [#allocation3], %s213
          %s215 = sand.u32 %s77, 1
          %s216 = scalar_lea.vmem [#allocation2], %s215
          %217 = dma.done %s214, 16
        $region40: #{tpu_custom_call.1} parent=35 // pred_fallthru
          _
      $region36: #{tpu_custom_call.1} parent=5 // pred_fallthru
        _
    $region6: #{tpu_custom_call.1} parent=1 // loop_footer
      %s15 = sadd.s32 1, %s11
    $region7: #{tpu_custom_call.1} parent=1 // loop_footer_branch
      %10 = sbr.rel target = $region3
    $region8: #{tpu_custom_call.1} parent=1 // loop_exit
      _
    %218 = vsyncpa [#allocation3], 1
    %s219 = scalar_lea.sflag [#allocation3], 1
    %220 = vsyncpa %s219, 1

</llo_original>
